<compile_context>
chip_gen: v7x
topology: tpu7x:2x2x1
jax: 0.10.0
libtpu: 0.0.40
codegen_flags: <defaults>
</compile_context>

<pallas_src>
import functools

import jax
import jax.numpy as jnp
from jax.experimental import pallas as pl
from jax.experimental.pallas import tpu as pltpu


def _round_up(x, m):
    return (x + m - 1) // m * m


def _num_tensorcores(default=2):
    """Best-effort TensorCore count (v7x has 2 TCs/chip); falls back to `default`."""
    try:
        info = pltpu.get_tpu_info()
    except Exception:
        return default
    for attr in ("num_cores", "core_count", "num_tensorcores", "tensorcore_count"):
        v = getattr(info, attr, None)
        if isinstance(v, int) and v > 0:
            return v
    return default


def _stats_kernel(x_ref, wt_ref, sum_ref, ssq_ref):
    # Per-split resident accumulators across the inner ("arbitrary") grid axis.
    @pl.when(pl.program_id(1) == 0)
    def _():
        sum_ref[...] = jnp.zeros_like(sum_ref)
        ssq_ref[...] = jnp.zeros_like(ssq_ref)

    # u = x @ W^T (bf16 MXU inputs, f32 accumulation). The Linear bias is irrelevant:
    # it shifts the mean but cancels in (y - mean_y), and does not change the variance.
    u = jnp.dot(x_ref[...], wt_ref[...], preferred_element_type=jnp.float32)
    c = u.shape[-1]
    # (tm, C) -> (tm/8, 8, C) regroup along sublanes (layout-free); reducing axis 0 is
    # plain vreg adds on the VPU, keeping (8, C) partials instead of a cross-sublane
    # reduction per tile.
    u3 = u.reshape(-1, 8, c)
    sum_ref[...] += jnp.sum(u3, axis=0)
    ssq_ref[...] += jnp.sum(u3 * u3, axis=0)


def _affine_lrelu_kernel(x_ref, wt_ref, scale_ref, shift_ref, o_ref, *, slope):
    # Recompute the Linear output for this row tile (cheaper than an f32 HBM
    # round-trip of y for Cin <= Cout_pad), then one FMA + select per element.
    u = jnp.dot(x_ref[...], wt_ref[...], preferred_element_type=jnp.float32)
    z = u * scale_ref[...] + shift_ref[...]
    o_ref[...] = jnp.where(z >= 0, z, slope * z).astype(o_ref.dtype)


def embedding_block(x, weight, bias, gamma, beta, *, eps=1e-5, slope=0.2,
                    tm=512, compute_dtype=jnp.bfloat16, out_dtype=jnp.bfloat16):
    """x: (B, N, Cin). weight: (Cout, Cin). bias/gamma/beta: (Cout,).

    Returns (B, N, Cout) in `out_dtype`. Matches the PyTorch module's forward with
    BatchNorm1d in training mode (batch statistics, biased variance).
    `bias` is accepted for interface parity but cancels exactly in the output.
    """
    del bias  # mathematically cancels under training-mode BatchNorm (see header).
    B, N, Cin = x.shape
    Cout = weight.shape[0]
    M = B * N

    assert tm % 16 == 0, "row tile must be a multiple of 16 (bf16 sublane packing)"
    tm_eff = min(tm, _round_up(M, 16))
    n_tiles = pl.cdiv(M, tm_eff)
    nsplit = _num_tensorcores() if n_tiles >= 2 else 1
    nsplit = max(1, min(nsplit, n_tiles))
    n_tiles = _round_up(n_tiles, nsplit)
    n_inner = n_tiles // nsplit
    M_pad = n_tiles * tm_eff

    Cout_pad = _round_up(Cout, 128)              # lane-dense output blocks
    vmem_limit = 64 * 1024 * 1024                # explicit, fits all of v5e/v6e/v7x

    # Pad fuses with the f32->bf16 cast (no separate HBM pass over x); zero rows
    # contribute exactly zero to the channel sums, so no in-kernel masking is needed.
    x2 = x.reshape(M, Cin).astype(compute_dtype)
    if M_pad > M:
        x2 = jnp.pad(x2, ((0, M_pad - M), (0, 0)))

    # Padded W^T columns are exactly zero => padded channels produce u = 0 and are
    # sliced away at the end (keep this invariant if the layout changes).
    wt = jnp.pad(weight.T.astype(jnp.float32),
                 ((0, 0), (0, Cout_pad - Cout))).astype(compute_dtype)   # (Cin, Cout_pad)
    gamma_p = jnp.pad(gamma.astype(jnp.float32), (0, Cout_pad - Cout), constant_values=1.0)
    beta_p = jnp.pad(beta.astype(jnp.float32), (0, Cout_pad - Cout))

    # ---- Pass 1: per-channel sum / sum-of-squares of u = x @ W^T ----
    s, ss = pl.pallas_call(
        _stats_kernel,
        out_shape=(
            jax.ShapeDtypeStruct((nsplit * 8, Cout_pad), jnp.float32),
            jax.ShapeDtypeStruct((nsplit * 8, Cout_pad), jnp.float32),
        ),
        grid_spec=pltpu.PrefetchScalarGridSpec(
            num_scalar_prefetch=0,
            grid=(nsplit, n_inner),
            in_specs=[
                pl.BlockSpec((tm_eff, Cin), lambda c, i: (c * n_inner + i, 0)),
                # Grid-constant weight block: single buffer (no double-buffer VMEM cost).
                pl.BlockSpec((Cin, Cout_pad), lambda c, i: (0, 0),
                             pipeline_mode=pl.Buffered(1)),
            ],
            out_specs=[
                pl.BlockSpec((8, Cout_pad), lambda c, i: (c, 0)),   # per-split resident acc
                pl.BlockSpec((8, Cout_pad), lambda c, i: (c, 0)),
            ],
        ),
        compiler_params=pltpu.CompilerParams(
            dimension_semantics=("parallel", "arbitrary"),
            vmem_limit_bytes=vmem_limit),
    )(x2, wt)

    # ---- Finalize (hoisted): per-channel BN scale/shift, computed once ----
    # NOTE: uncentered E[u^2] - mean^2 in f32, clamped at 0; adequate while |mean| is
    # not >> std. Switch to a centered second accumulation if BN accuracy is critical.
    inv_n = 1.0 / float(M)
    tot = jnp.sum(s, axis=0)                       # (Cout_pad,)
    tot2 = jnp.sum(ss, axis=0)
    mean_u = tot * inv_n
    var = jnp.maximum(tot2 * inv_n - mean_u * mean_u, 0.0)     # biased variance
    scale_v = gamma_p * jax.lax.rsqrt(var + eps)
    shift_v = beta_p - mean_u * scale_v            # bias cancels; do NOT subtract it here
    scale = scale_v.reshape(1, Cout_pad)
    shift = shift_v.reshape(1, Cout_pad)

    # ---- Pass 2: recompute Linear per tile + fused BN affine + LeakyReLU ----
    out = pl.pallas_call(
        functools.partial(_affine_lrelu_kernel, slope=slope),
        out_shape=jax.ShapeDtypeStruct((M_pad, Cout_pad), out_dtype),
        grid_spec=pltpu.PrefetchScalarGridSpec(
            num_scalar_prefetch=0,
            grid=(n_tiles,),
            in_specs=[
                pl.BlockSpec((tm_eff, Cin), lambda i: (i, 0)),
                pl.BlockSpec((Cin, Cout_pad), lambda i: (0, 0),
                             pipeline_mode=pl.Buffered(1)),
                pl.BlockSpec((1, Cout_pad), lambda i: (0, 0),
                             pipeline_mode=pl.Buffered(1)),
                pl.BlockSpec((1, Cout_pad), lambda i: (0, 0),
                             pipeline_mode=pl.Buffered(1)),
            ],
            out_specs=pl.BlockSpec((tm_eff, Cout_pad), lambda i: (i, 0)),
        ),
        compiler_params=pltpu.CompilerParams(
            dimension_semantics=("parallel",),
            vmem_limit_bytes=vmem_limit),
    )(x2, wt, scale, shift)

    # Un-pad only when actually padded (avoids the extra HBM copy when shapes align);
    # when needed, it is done at out_dtype width (bf16 by default).
    if M_pad == M and Cout_pad == Cout:
        return out.reshape(B, N, Cout)
    return out[:M, :Cout].reshape(B, N, Cout)


def _reference(x, weight, bias, gamma, beta, eps=1e-5, slope=0.2):
    y = jnp.einsum("bnc,oc->bno", x, weight) + bias              # Linear
    mean = jnp.mean(y, axis=(0, 1), keepdims=True)               # BatchNorm1d (training)
    var = jnp.mean((y - mean) ** 2, axis=(0, 1), keepdims=True)  # biased variance
    z = (y - mean) * jax.lax.rsqrt(var + eps) * gamma + beta
    return jnp.where(z >= 0, z, slope * z)                       # LeakyReLU(0.2)


if __name__ == "__main__":
    key = jax.random.PRNGKey(0)
    kx, kw, kb, kg, kbe, kx2 = jax.random.split(key, 6)

    # --- small case (single tile, nsplit = 1) ---
    B, N, Cin, Cout = 2, 8, 16, 32
    x = jax.random.normal(kx, (B, N, Cin), dtype=jnp.float32)
    weight = jax.random.normal(kw, (Cout, Cin), dtype=jnp.float32) * (1.0 / jnp.sqrt(Cin))
    bias = jax.random.normal(kb, (Cout,), dtype=jnp.float32) * 0.1
    gamma = 1.0 + 0.1 * jax.random.normal(kg, (Cout,), dtype=jnp.float32)
    beta = 0.05 * jax.random.normal(kbe, (Cout,), dtype=jnp.float32)

    out = jax.block_until_ready(embedding_block(x, weight, bias, gamma, beta))
    ref = _reference(x, weight, bias, gamma, beta)
    assert out.shape == (B, N, Cout)
    assert jnp.allclose(out.astype(jnp.float32), ref, atol=5e-2, rtol=5e-2), \
        "mismatch vs reference (small)"

    # --- multi-tile case (row padding + per-core split stats path) ---
    B2, N2 = 4, 200
    xb = jax.random.normal(kx2, (B2, N2, Cin), dtype=jnp.float32)
    out2 = jax.block_until_ready(
        embedding_block(xb, weight, bias, gamma, beta, tm=64, out_dtype=jnp.float32))
    ref2 = _reference(xb, weight, bias, gamma, beta)
    assert out2.shape == (B2, N2, Cout)
    assert jnp.allclose(out2, ref2, atol=5e-2, rtol=5e-2), "mismatch vs reference (tiled)"

    print("KERNEL_OK")
</pallas_src>

<mosaic_0001>
module attributes {stable_mosaic.version = 11 : i64} {
  func.func @_stats_kernel(%arg0: i32, %arg1: i32, %arg2: memref<16x16xbf16, #tpu.memory_space<vmem>>, %arg3: memref<16x128xbf16, #tpu.memory_space<vmem>>, %arg4: memref<8x128xf32, #tpu.memory_space<vmem>>, %arg5: memref<8x128xf32, #tpu.memory_space<vmem>>) attributes {dimension_semantics = [#tpu.dimension_semantics<parallel>, #tpu.dimension_semantics<arbitrary>], iteration_bounds = array<i64: 1, 1>, scalar_prefetch = 0 : i64, scratch_operands = 0 : i64, tpu.core_type = #tpu.core_type<tc>, window_params = [{transform_indices = @transform_0, window_bounds = array<i64: 16, 16>}, {pipeline_mode = #tpu.pipeline_mode<synchronous>, transform_indices = @transform_1, window_bounds = array<i64: 16, 128>}, {transform_indices = @transform_2, window_bounds = array<i64: 8, 128>}, {transform_indices = @transform_3, window_bounds = array<i64: 8, 128>}]} {
    %c0_i32 = arith.constant 0 : i32
    %0 = arith.cmpi eq, %arg1, %c0_i32 : i32
    %1 = arith.extui %0 : i1 to i32
    %c0_i32_0 = arith.constant 0 : i32
    %2 = arith.cmpi ne, %1, %c0_i32_0 : i32
    scf.if %2 {
      %cst_14 = arith.constant 0.000000e+00 : f32
      %16 = vector.broadcast %cst_14 : f32 to vector<8x128xf32>
      %c0_15 = arith.constant 0 : index
      %c0_16 = arith.constant 0 : index
      %17 = vector.load %arg4[%c0_15, %c0_16] : memref<8x128xf32, #tpu.memory_space<vmem>>, vector<8x128xf32>
      tpu.vector_store %arg4[%c0_15, %c0_16], %16 {strides = array<i32>} : memref<8x128xf32, #tpu.memory_space<vmem>>, vector<8x128xf32>,
      %cst_17 = arith.constant 0.000000e+00 : f32
      %18 = vector.broadcast %cst_17 : f32 to vector<8x128xf32>
      %c0_18 = arith.constant 0 : index
      %c0_19 = arith.constant 0 : index
      %19 = vector.load %arg5[%c0_18, %c0_19] : memref<8x128xf32, #tpu.memory_space<vmem>>, vector<8x128xf32>
      tpu.vector_store %arg5[%c0_18, %c0_19], %18 {strides = array<i32>} : memref<8x128xf32, #tpu.memory_space<vmem>>, vector<8x128xf32>,
    } else {
    }
    %c0 = arith.constant 0 : index
    %c0_1 = arith.constant 0 : index
    %3 = vector.load %arg2[%c0, %c0_1] : memref<16x16xbf16, #tpu.memory_space<vmem>>, vector<16x16xbf16>
    %c0_2 = arith.constant 0 : index
    %c0_3 = arith.constant 0 : index
    %4 = vector.load %arg3[%c0_2, %c0_3] : memref<16x128xbf16, #tpu.memory_space<vmem>>, vector<16x128xbf16>
    %cst = arith.constant dense<0.000000e+00> : vector<16x128xf32>
    %5 = tpu.matmul %3, %4, %cst {dimension_numbers = #tpu.dot_dimension_numbers<[1], [0], [0], [1], [0, 0, 1, 1], [], []>} : vector<16x16xbf16>, vector<16x128xbf16>, vector<16x128xf32> -> vector<16x128xf32>
    %6 = vector.shape_cast %5 : vector<16x128xf32> to vector<2x8x128xf32>
    %c0_4 = arith.constant 0 : index
    %c0_5 = arith.constant 0 : index
    %7 = vector.load %arg4[%c0_4, %c0_5] : memref<8x128xf32, #tpu.memory_space<vmem>>, vector<8x128xf32>
    %cst_6 = arith.constant dense<0.000000e+00> : vector<8x128xf32>
    %8 = vector.multi_reduction <add>, %6, %cst_6 [0] : vector<2x8x128xf32> to vector<8x128xf32>
    %9 = arith.addf %7, %8 : vector<8x128xf32>
    %c0_7 = arith.constant 0 : index
    %c0_8 = arith.constant 0 : index
    %10 = vector.load %arg4[%c0_7, %c0_8] : memref<8x128xf32, #tpu.memory_space<vmem>>, vector<8x128xf32>
    tpu.vector_store %arg4[%c0_7, %c0_8], %9 {strides = array<i32>} : memref<8x128xf32, #tpu.memory_space<vmem>>, vector<8x128xf32>,
    %c0_9 = arith.constant 0 : index
    %c0_10 = arith.constant 0 : index
    %11 = vector.load %arg5[%c0_9, %c0_10] : memref<8x128xf32, #tpu.memory_space<vmem>>, vector<8x128xf32>
    %12 = arith.mulf %6, %6 : vector<2x8x128xf32>
    %cst_11 = arith.constant dense<0.000000e+00> : vector<8x128xf32>
    %13 = vector.multi_reduction <add>, %12, %cst_11 [0] : vector<2x8x128xf32> to vector<8x128xf32>
    %14 = arith.addf %11, %13 : vector<8x128xf32>
    %c0_12 = arith.constant 0 : index
    %c0_13 = arith.constant 0 : index
    %15 = vector.load %arg5[%c0_12, %c0_13] : memref<8x128xf32, #tpu.memory_space<vmem>>, vector<8x128xf32>
    tpu.vector_store %arg5[%c0_12, %c0_13], %14 {strides = array<i32>} : memref<8x128xf32, #tpu.memory_space<vmem>>, vector<8x128xf32>,
    return
  }
  func.func @transform_0(%arg0: i32, %arg1: i32) -> (i32, i32) {
    %c1_i32 = arith.constant 1 : i32
    %0 = arith.muli %arg0, %c1_i32 : i32
    %1 = arith.addi %0, %arg1 : i32
    %c0_i32 = arith.constant 0 : i32
    %c0_i32_0 = arith.constant 0 : i32
    return %1, %c0_i32 : i32, i32
  }
  func.func @transform_1(%arg0: i32, %arg1: i32) -> (i32, i32) {
    %c0_i32 = arith.constant 0 : i32
    %c0_i32_0 = arith.constant 0 : i32
    %c0_i32_1 = arith.constant 0 : i32
    return %c0_i32, %c0_i32_0 : i32, i32
  }
  func.func @transform_2(%arg0: i32, %arg1: i32) -> (i32, i32) {
    %c0_i32 = arith.constant 0 : i32
    %c0_i32_0 = arith.constant 0 : i32
    return %arg0, %c0_i32 : i32, i32
  }
  func.func @transform_3(%arg0: i32, %arg1: i32) -> (i32, i32) {
    %c0_i32 = arith.constant 0 : i32
    %c0_i32_0 = arith.constant 0 : i32
    return %arg0, %c0_i32 : i32, i32
  }
}

</mosaic_0001>

<llo_original>
// kernel: tpu_custom_call.1
$region0: #{tpu_custom_call.1}
  #allocation0 [shape = 'u32[]', space=smem, size = 0x4, offset = 0x4, fixed_abs, tag = 'smem constant byte address 0x4 - core index']
  #allocation1 [shape = 'u32[144,128]{1,0:T(1,128)}', space=vmem, size = 0x12000, scoped, tag = 'internal scratch']
  %s0 = inlined_call_operand.hbm [shape: bf16[16,16], index: 0, kind: input, shape index: {}]
  %s1 = inlined_call_operand.hbm [shape: bf16[16,128], index: 1, kind: input, shape index: {}]
  %s2 = inlined_call_operand.hbm [shape: f32[8,128], index: 2, kind: output, shape index: {0}]
  %s3 = inlined_call_operand.hbm [shape: f32[8,128], index: 3, kind: output, shape index: {1}]
  %4 = xla_tuple %s2, %s3
  %s5 = sld [smem:[#allocation0]]
  $region38: #{tpu_custom_call.1} parent=0
    _
  %s7 = ssub.s32 1, %s5
  %s8 = scalar_select 0, %s7, %s5
  $region1: #{tpu_custom_call.1} parent=0
    #allocation2 [shape = 'u8[4096]{0}', space=vmem, size = 0x1000, scoped, tag = 'input window, operand 0, single buffered']
    #allocation3 [shape = 's32[1]{0}', space=sflag, size = 0x4, scoped, tag = 'scoped memory for tpu_custom_call.1']
    #allocation4 [shape = 's32[1]{0}', space=sflag, size = 0x4, scoped, tag = 'scoped memory for tpu_custom_call.1']
    #allocation5 [shape = 'u8[4096]{0}', space=vmem, size = 0x1000, scoped, tag = 'input window, operand 1, single buffered']
    #allocation6 [shape = 's32[1]{0}', space=sflag, size = 0x4, scoped, tag = 'scoped memory for tpu_custom_call.1']
    #allocation7 [shape = 'u8[4096]{0}', space=vmem, size = 0x1000, scoped, tag = 'output window, operand 0, single buffered']
    #allocation8 [shape = 'u8[4096]{0}', space=vmem, size = 0x1000, scoped, tag = 'output window, operand 1, single buffered']
    #allocation9 [shape = 's32[1]{0}', space=sflag, size = 0x4, scoped, tag = 'scoped memory for tpu_custom_call.1']
    %9 = vsyncpa [#allocation3], 0
    %10 = vsyncpa [#allocation6], 0
    %11 = vsyncpa [#allocation4], 0
    %12 = vsyncpa [#allocation9], 0
    // Predicated region
    $region2: #{tpu_custom_call.1} parent=1 // pred_check
      _
    $region3: #{tpu_custom_call.1} parent=1 // pred_check_branch
      %14 = sbr.rel (0) target = $region5
    $region4: #{tpu_custom_call.1} parent=1 // pred_region
      %s15 = sadd.s32 0, 0
      %s16 = smul.u32 2, %s15
      %s18 = ssub.s32 128, 128
      %19 = vsyncadd [#allocation3], %s18
      %s20 = smul.addr %s16, 64
      %s21 = scalar_lea.hbm %s0, %s20
      %s22 = sshll.u32 [#allocation2], 4
      %s23 = int_to_ptr.vmem [resolvable:$true] %s22
      %28 = dma.hbm_to_vmem [thread:$0]  %s21, 128, %s23, [#allocation3], 64, 64, 4
    $region5: #{tpu_custom_call.1} parent=1 // pred_fallthru
      _
    // Predicated region
    $region6: #{tpu_custom_call.1} parent=1 // pred_check
      _
    $region7: #{tpu_custom_call.1} parent=1 // pred_check_branch
      %30 = sbr.rel (0) target = $region9
    $region8: #{tpu_custom_call.1} parent=1 // pred_region
      %s32 = ssub.s32 128, 128
      %33 = vsyncadd [#allocation6], %s32
      %s34 = sshll.u32 [#allocation5], 4
      %s35 = int_to_ptr.vmem [resolvable:$true] %s34
      %40 = dma.hbm_to_vmem [thread:$0]  %s1, 128, %s35, [#allocation6], 64, 64, 4
    $region9: #{tpu_custom_call.1} parent=1 // pred_fallthru
      _
    // Predicated region
    $region10: #{tpu_custom_call.1} parent=1 // pred_check
      _
    $region11: #{tpu_custom_call.1} parent=1 // pred_check_branch
      %42 = sbr.rel (0) target = $region13
    $region12: #{tpu_custom_call.1} parent=1 // pred_region
      %43 = dma.done [#allocation3], 128
    $region13: #{tpu_custom_call.1} parent=1 // pred_fallthru
      _
    // Predicated region
    $region14: #{tpu_custom_call.1} parent=1 // pred_check
      _
    $region15: #{tpu_custom_call.1} parent=1 // pred_check_branch
      %45 = sbr.rel (0) target = $region17
    $region16: #{tpu_custom_call.1} parent=1 // pred_region
      %46 = dma.done [#allocation6], 128
    $region17: #{tpu_custom_call.1} parent=1 // pred_fallthru
      _
    %s47 = sadd.s32 0, 0
    %s48 = smul.u32 2, %s47
    %p50 = scmp.eq.s32.totalorder 0, 0
    // Predicated region
    $region18: #{tpu_custom_call.1} parent=1 // pred_check
      %p51 = pneg %p50
    $region19: #{tpu_custom_call.1} parent=1 // pred_check_branch
      %53 = sbr.rel (%p51) target = $region21
    $region20: #{tpu_custom_call.1} parent=1 // pred_region
      %54 = vst [vmem:[#allocation7] sm:$0xff] 0.0
      %55 = vst [vmem:[#allocation8] sm:$0xff] 0.0
    $region21: #{tpu_custom_call.1} parent=1 // pred_fallthru
      _
    %v56 = vld [vmem:[#allocation2] sm:$0xf]
    %v57 = vld [vmem:[#allocation2 + $0x4] sm:$0xf]
    %v58 = vld [vmem:[#allocation5] sm:$0xf]
    %v59 = vld [vmem:[#allocation5 + $0x4] sm:$0xf]
    %v62 = vunpack.c.l.b16 %v56
    %v63 = vunpack.c.l.b16 %v57
    %v64 = vpack.c.b16 %v63, %v62
    %v67 = vunpack.c.l.b16 %v58
    %v68 = vunpack.c.l.b16 %v59
    %v69 = vpack.c.b16 %v68, %v67
    %vm71 = vcmask 130048
    %v73 = vsel %vm71, %v64, 0
    %75 = vmatprep.subr.bf16.mxu0 0
    %76 = vmatpush1.bf16.msra.mxu0 %v69
    %77 = vmatprep.subr.bf16.mxu0 0
    %78 = vmatpush1.bf16.msra.mxu0 0
    %79 = vmatprep.subr.bf16.mxu0 0
    %80 = vmatpush1.bf16.msra.mxu0 0
    %81 = vmatprep.subr.bf16.mxu0 0
    %82 = vmatpush1.bf16.msra.mxu0 0
    %83 = vmatprep.subr.bf16.mxu0 0
    %84 = vmatpush1.bf16.msra.mxu0 0
    %85 = vmatprep.subr.bf16.mxu0 0
    %86 = vmatpush1.bf16.msra.mxu0 0
    %87 = vmatprep.subr.bf16.mxu0 0
    %88 = vmatpush1.bf16.msra.mxu0 0
    %89 = vmatprep.subr.bf16.mxu0 0
    %90 = vmatpush1.bf16.msra.mxu0 0
    %91 = vmatprep.subr.bf16.mxu0 0
    %92 = vmatpush1.bf16.msra.mxu0 0
    %93 = vmatprep.subr.bf16.mxu0 0
    %94 = vmatpush1.bf16.msra.mxu0 0
    %95 = vmatprep.subr.bf16.mxu0 0
    %96 = vmatpush1.bf16.msra.mxu0 0
    %97 = vmatprep.subr.bf16.mxu0 0
    %98 = vmatpush1.bf16.msra.mxu0 0
    %99 = vmatprep.subr.bf16.mxu0 0
    %100 = vmatpush1.bf16.msra.mxu0 0
    %101 = vmatprep.subr.bf16.mxu0 0
    %102 = vmatpush1.bf16.msra.mxu0 0
    %103 = vmatprep.subr.bf16.mxu0 0
    %104 = vmatpush1.bf16.msra.mxu0 0
    %105 = vmatprep.subr.bf16.mxu0 0
    %106 = vmatpush1.bf16.msra.mxu0 0
    %107 = vmatprep.mubr.bf16.mxu0 0
    %108 = vmatmul.mubr.bf16.gmra.mrb[0].mxu0 %v73
    %v109 = vpop.f32.mrb[0].mxu0
    %v110 = vadd.f32 0.0, %v109
    %v111 = vpop.f32.mrb[0].mxu0
    %v112 = vpop.f32.mrb[0].mxu0
    %v113 = vadd.f32 0.0, %v112
    %v114 = vpop.f32.mrb[0].mxu0
    %115 = vdwg.mxu0
    %v116 = vld [vmem:[#allocation7] sm:$0xff]
    %v117 = vadd.f32 %v110, %v113
    %v118 = vadd.f32 %v116, %v117
    %119 = vst [vmem:[#allocation7] sm:$0xff] %v118
    %v120 = vld [vmem:[#allocation8] sm:$0xff]
    %v121 = vmul.f32 %v110, %v110
    %v122 = vmul.f32 %v113, %v113
    %v123 = vadd.f32 %v121, %v122
    %v124 = vadd.f32 %v120, %v123
    %125 = vst [vmem:[#allocation8] sm:$0xff] %v124
    // Predicated region
    $region22: #{tpu_custom_call.1} parent=1 // pred_check
      _
    $region23: #{tpu_custom_call.1} parent=1 // pred_check_branch
      %127 = sbr.rel (0) target = $region25
    $region24: #{tpu_custom_call.1} parent=1 // pred_region
      %s129 = ssub.s32 128, 128
      %130 = vsyncadd [#allocation4], %s129
      %s132 = sshll.u32 [#allocation7], 4
      %s133 = int_to_ptr.vmem [resolvable:$true] %s132
      %135 = dma.vmem_to_hbm [thread:$0]  %s133, 128, %s2, [#allocation4]
    $region25: #{tpu_custom_call.1} parent=1 // pred_fallthru
      _
    // Predicated region
    $region26: #{tpu_custom_call.1} parent=1 // pred_check
      _
    $region27: #{tpu_custom_call.1} parent=1 // pred_check_branch
      %137 = sbr.rel (0) target = $region29
    $region28: #{tpu_custom_call.1} parent=1 // pred_region
      %s139 = ssub.s32 128, 128
      %140 = vsyncadd [#allocation9], %s139
      %s142 = sshll.u32 [#allocation8], 4
      %s143 = int_to_ptr.vmem [resolvable:$true] %s142
      %145 = dma.vmem_to_hbm [thread:$0]  %s143, 128, %s3, [#allocation9]
    $region29: #{tpu_custom_call.1} parent=1 // pred_fallthru
      _
    // Predicated region
    $region30: #{tpu_custom_call.1} parent=1 // pred_check
      _
    $region31: #{tpu_custom_call.1} parent=1 // pred_check_branch
      %147 = sbr.rel (0) target = $region33
    $region32: #{tpu_custom_call.1} parent=1 // pred_region
      %148 = dma.done [#allocation4], 128
    $region33: #{tpu_custom_call.1} parent=1 // pred_fallthru
      _
    // Predicated region
    $region34: #{tpu_custom_call.1} parent=1 // pred_check
      _
    $region35: #{tpu_custom_call.1} parent=1 // pred_check_branch
      %150 = sbr.rel (0) target = $region37
    $region36: #{tpu_custom_call.1} parent=1 // pred_region
      %151 = dma.done [#allocation9], 128
    $region37: #{tpu_custom_call.1} parent=1 // pred_fallthru
      _
    %152 = vsyncpa [#allocation3], 1
    %153 = vsyncpa [#allocation6], 1
    %154 = vsyncpa [#allocation4], 1
    %155 = vsyncpa [#allocation9], 1

</llo_original>
